<compile_context>
chip_gen: v7x
topology: tpu7x:2x2x1
jax: 0.10.0
libtpu: 0.0.40
codegen_flags: <defaults>
</compile_context>

<pallas_src>
import functools

import jax
import jax.numpy as jnp
from jax.experimental import pallas as pl
from jax.experimental.pallas import tpu as pltpu

LATENT_DIM = 8
FEATS = [16, 32, 64]
_N_LAYERS = 4
_PAD = 128  # pad every layer width to the vreg lane width


def _gelu(x, approximate):
    if approximate:
        # tanh-approx GELU (same form as jax.nn.gelu(approximate=True)):
        # transcendental goes to the EUP slot instead of a long VALU polynomial.
        c = jnp.float32(0.7978845608028654)  # sqrt(2/pi)
        return 0.5 * x * (1.0 + jnp.tanh(c * (x + 0.044715 * x * x * x)))
    # Exact erf-based GELU == PyTorch nn.GELU() default.
    return 0.5 * x * (1.0 + jax.lax.erf(x * jnp.float32(0.7071067811865476)))


def _mlp_kernel(latent_dim, approximate, z_ref, w_ref, b_ref, ztau_ref):
    tm = z_ref.shape[0]
    in_dim = latent_dim + 2

    # Lane-pad the (tm, in_dim) input to (tm, 128).  Padded lanes are exact
    # zeros -> padded weight rows/cols contribute nothing and gelu(0) == 0, so
    # results match the unpadded MLP exactly.
    pad = jnp.zeros((tm, _PAD - in_dim), jnp.float32)
    h = jnp.concatenate([z_ref[...], pad], axis=1)

    b = b_ref[...]  # (4, 128)
    for k in range(3):
        h = _gelu(
            jnp.dot(h, w_ref[k], preferred_element_type=jnp.float32)
            + b[k:k + 1, :],
            approximate)
    y = jnp.dot(h, w_ref[3], preferred_element_type=jnp.float32) + b[3:4, :]
    ztau_ref[...] = y[:, :latent_dim].astype(ztau_ref.dtype)


def pack_params(params, latent_dim=LATENT_DIM, feats=FEATS):
    """Pack per-layer (in,out) weights and (1,out) biases into zero-padded slabs.

    Returns:
      w_all: (4, 128, 128) f32 — layer k at [k, :in_k, :out_k], zeros elsewhere.
      b_all: (4, 128)      f32 — layer k bias at [k, :out_k], zeros elsewhere.
    """
    dims = [latent_dim + 2] + list(feats) + [latent_dim]
    w_all = jnp.zeros((_N_LAYERS, _PAD, _PAD), jnp.float32)
    b_all = jnp.zeros((_N_LAYERS, _PAD), jnp.float32)
    for k in range(_N_LAYERS):
        fin, fout = dims[k], dims[k + 1]
        w_all = w_all.at[k, :fin, :fout].set(params[f"w{k + 1}"])
        b_all = b_all.at[k, :fout].set(params[f"b{k + 1}"].reshape(fout))
    return w_all, b_all


def _round_up(x, m):
    return ((x + m - 1) // m) * m


def _pick_tm(batch, block_m):
    """Batch-tile size: large tiles, multiple of 8, and >= 2 grid steps when the
    batch is big enough so a 2-TensorCore chip (v7x) gets both cores working."""
    if batch <= 16:
        return batch  # single tiny tile; splitting is pure overhead
    tm = min(block_m, _round_up(pl.cdiv(batch, 2), 8))
    return min(tm, _round_up(batch, 8))


def propagator_concat_forward(z, tau, alpha, w_all, b_all, *,
                              block_m=2048, approximate_gelu=True):
    """JAX/Pallas equivalent of Propagator_concat.forward.

    z:     (B, 1, latent_dim) f32
    tau:   (B, 1)             f32
    alpha: (B, 1)             f32
    w_all, b_all: packed params from pack_params().
    Returns (z_tau, z_) matching the PyTorch module.
    """
    latent_dim = z.shape[-1]
    in_dim = latent_dim + 2

    zproj = jnp.squeeze(z, axis=1)                       # metadata-only reshape
    z_cat = jnp.concatenate([zproj, tau, alpha], axis=1)  # built once in XLA
    B = z_cat.shape[0]

    tm = _pick_tm(B, block_m)
    grid = (pl.cdiv(B, tm),)

    kernel = functools.partial(_mlp_kernel, latent_dim, approximate_gelu)

    cost = pl.CostEstimate(
        flops=2 * _N_LAYERS * B * _PAD * _PAD,
        transcendentals=3 * B * _PAD,
        bytes_accessed=4 * (B * in_dim + B * latent_dim
                            + w_all.size + b_all.size),
    )

    z_tau = pl.pallas_call(
        kernel,
        out_shape=jax.ShapeDtypeStruct((B, latent_dim), jnp.float32),
        grid=grid,
        in_specs=[
            pl.BlockSpec((tm, in_dim), lambda i: (i, 0)),
            # Weights/biases: constant block index -> stay VMEM-resident, no
            # re-DMA across batch tiles.
            pl.BlockSpec((_N_LAYERS, _PAD, _PAD), lambda i: (0, 0, 0)),
            pl.BlockSpec((_N_LAYERS, _PAD), lambda i: (0, 0)),
        ],
        out_specs=pl.BlockSpec((tm, latent_dim), lambda i: (i, 0)),
        compiler_params=pltpu.CompilerParams(
            dimension_semantics=("parallel",),      # shard batch grid over TCs
            vmem_limit_bytes=32 * 1024 * 1024,      # safe on v7x (64 MiB phys)
        ),
        cost_estimate=cost,
    )(z_cat, w_all, b_all)

    return z_tau, z_cat


def init_params(key, latent_dim=LATENT_DIM, feats=FEATS):
    """Deterministic synthetic parameter init (PyTorch-Linear-like uniform)."""
    dims = [latent_dim + 2] + list(feats) + [latent_dim]
    params = {}
    for i in range(_N_LAYERS):
        fan_in, fan_out = dims[i], dims[i + 1]
        key, kw, kb = jax.random.split(key, 3)
        bound = 1.0 / jnp.sqrt(jnp.float32(fan_in))
        params[f"w{i + 1}"] = jax.random.uniform(
            kw, (fan_in, fan_out), jnp.float32, -bound, bound)
        params[f"b{i + 1}"] = jax.random.uniform(
            kb, (1, fan_out), jnp.float32, -bound, bound)
    return params


def _reference_forward(z, tau, alpha, params):
    """Pure-JAX reference (exact erf GELU, matches nn.GELU())."""
    zproj = jnp.squeeze(z, axis=1)
    z_ = jnp.concatenate((zproj, tau, alpha), axis=1)
    h = z_
    for i in range(1, 4):
        h = jax.nn.gelu(h @ params[f"w{i}"] + params[f"b{i}"], approximate=False)
    z_tau = h @ params["w4"] + params["b4"]
    return z_tau, z_


if __name__ == "__main__":
    key = jax.random.PRNGKey(0)
    kp, kz, kt, ka = jax.random.split(key, 4)

    params = init_params(kp)
    w_all, b_all = pack_params(params)

    fwd = jax.jit(propagator_concat_forward,
                  static_argnames=("block_m", "approximate_gelu"))

    # --- small batch (single tile) ------------------------------------------
    B = 8
    z = jax.random.normal(kz, (B, 1, LATENT_DIM), jnp.float32)
    tau = jax.random.normal(kt, (B, 1), jnp.float32)
    alpha = jax.random.normal(ka, (B, 1), jnp.float32)
    ref_tau, ref_cat = _reference_forward(z, tau, alpha, params)

    # Exact-GELU path: must match PyTorch fp32 numerics tightly.
    z_tau, z_cat = fwd(z, tau, alpha, w_all, b_all, approximate_gelu=False)
    jax.block_until_ready((z_tau, z_cat))
    assert z_tau.shape == (B, LATENT_DIM)
    assert z_cat.shape == (B, LATENT_DIM + 2)
    assert jnp.allclose(z_cat, ref_cat)
    assert jnp.allclose(z_tau, ref_tau, atol=1e-5, rtol=1e-5)

    # Default tanh-GELU path: ~1e-3 tolerance vs. nn.GELU().
    z_tau_a, z_cat_a = fwd(z, tau, alpha, w_all, b_all)
    jax.block_until_ready((z_tau_a, z_cat_a))
    assert jnp.allclose(z_cat_a, ref_cat)
    assert jnp.allclose(z_tau_a, ref_tau, atol=5e-3, rtol=5e-3)

    # --- larger, non-tile-aligned batch: exercises multi-step grid + remainder
    B2 = 200
    kz2, kt2, ka2 = jax.random.split(kz, 3)
    z2 = jax.random.normal(kz2, (B2, 1, LATENT_DIM), jnp.float32)
    tau2 = jax.random.normal(kt2, (B2, 1), jnp.float32)
    alpha2 = jax.random.normal(ka2, (B2, 1), jnp.float32)
    ref_tau2, ref_cat2 = _reference_forward(z2, tau2, alpha2, params)

    z_tau2, z_cat2 = fwd(z2, tau2, alpha2, w_all, b_all,
                         approximate_gelu=False)
    jax.block_until_ready((z_tau2, z_cat2))
    assert jnp.allclose(z_cat2, ref_cat2)
    assert jnp.allclose(z_tau2, ref_tau2, atol=1e-5, rtol=1e-5)

    print("KERNEL_OK")
</pallas_src>

<mosaic_0001>
module attributes {stable_mosaic.version = 11 : i64} {
  func.func @_mlp_kernel(%arg0: i32, %arg1: memref<8x10xf32, #tpu.memory_space<vmem>>, %arg2: memref<4x128x128xf32, #tpu.memory_space<vmem>>, %arg3: memref<4x128xf32, #tpu.memory_space<vmem>>, %arg4: memref<8x8xf32, #tpu.memory_space<vmem>>) attributes {dimension_semantics = [#tpu.dimension_semantics<parallel>], iteration_bounds = array<i64: 1>, scalar_prefetch = 0 : i64, scratch_operands = 0 : i64, tpu.core_type = #tpu.core_type<tc>, window_params = [{transform_indices = @transform_0, window_bounds = array<i64: 8, 10>}, {pipeline_mode = #tpu.pipeline_mode<synchronous>, transform_indices = @transform_1, window_bounds = array<i64: 4, 128, 128>}, {pipeline_mode = #tpu.pipeline_mode<synchronous>, transform_indices = @transform_2, window_bounds = array<i64: 4, 128>}, {transform_indices = @transform_3, window_bounds = array<i64: 8, 8>}]} {
    %cst = arith.constant 0.000000e+00 : f32
    %0 = vector.broadcast %cst : f32 to vector<8x118xf32>
    %c0 = arith.constant 0 : index
    %c0_0 = arith.constant 0 : index
    %1 = vector.load %arg1[%c0, %c0_0] : memref<8x10xf32, #tpu.memory_space<vmem>>, vector<8x10xf32>
    %2 = tpu.concatenate %1, %0 in 1 : vector<8x10xf32>, vector<8x118xf32> -> vector<8x128xf32>
    %c0_1 = arith.constant 0 : index
    %c0_2 = arith.constant 0 : index
    %3 = vector.load %arg3[%c0_1, %c0_2] : memref<4x128xf32, #tpu.memory_space<vmem>>, vector<4x128xf32>
    %c0_3 = arith.constant 0 : index
    %c0_4 = arith.constant 0 : index
    %c0_5 = arith.constant 0 : index
    %4 = vector.load %arg2[%c0_3, %c0_4, %c0_5] : memref<4x128x128xf32, #tpu.memory_space<vmem>>, vector<1x128x128xf32>
    %5 = vector.shape_cast %4 : vector<1x128x128xf32> to vector<128x128xf32>
    %cst_6 = arith.constant dense<0.000000e+00> : vector<8x128xf32>
    %6 = tpu.matmul %2, %5, %cst_6 {dimension_numbers = #tpu.dot_dimension_numbers<[1], [0], [0], [1], [0, 0, 1, 1], [], []>} : vector<8x128xf32>, vector<128x128xf32>, vector<8x128xf32> -> vector<8x128xf32>
    %7 = vector.extract_strided_slice %3 {offsets = [0, 0], sizes = [1, 128], strides = [1, 1]} : vector<4x128xf32> to vector<1x128xf32>
    %8 = vector.broadcast %7 : vector<1x128xf32> to vector<8x128xf32>
    %9 = arith.addf %6, %8 : vector<8x128xf32>
    %cst_7 = arith.constant 5.000000e-01 : f32
    %10 = vector.broadcast %cst_7 : f32 to vector<8x128xf32>
    %11 = arith.mulf %10, %9 : vector<8x128xf32>
    %cst_8 = arith.constant 0.707106769 : f32
    %12 = vector.broadcast %cst_8 : f32 to vector<8x128xf32>
    %13 = arith.mulf %9, %12 : vector<8x128xf32>
    %14 = math.erf %13 : vector<8x128xf32>
    %cst_9 = arith.constant 1.000000e+00 : f32
    %15 = vector.broadcast %cst_9 : f32 to vector<8x128xf32>
    %16 = arith.addf %15, %14 : vector<8x128xf32>
    %17 = arith.mulf %11, %16 : vector<8x128xf32>
    %c1 = arith.constant 1 : index
    %c0_10 = arith.constant 0 : index
    %c0_11 = arith.constant 0 : index
    %18 = vector.load %arg2[%c1, %c0_10, %c0_11] : memref<4x128x128xf32, #tpu.memory_space<vmem>>, vector<1x128x128xf32>
    %19 = vector.shape_cast %18 : vector<1x128x128xf32> to vector<128x128xf32>
    %cst_12 = arith.constant dense<0.000000e+00> : vector<8x128xf32>
    %20 = tpu.matmul %17, %19, %cst_12 {dimension_numbers = #tpu.dot_dimension_numbers<[1], [0], [0], [1], [0, 0, 1, 1], [], []>} : vector<8x128xf32>, vector<128x128xf32>, vector<8x128xf32> -> vector<8x128xf32>
    %21 = vector.extract_strided_slice %3 {offsets = [1, 0], sizes = [1, 128], strides = [1, 1]} : vector<4x128xf32> to vector<1x128xf32>
    %22 = vector.broadcast %21 : vector<1x128xf32> to vector<8x128xf32>
    %23 = arith.addf %20, %22 : vector<8x128xf32>
    %cst_13 = arith.constant 5.000000e-01 : f32
    %24 = vector.broadcast %cst_13 : f32 to vector<8x128xf32>
    %25 = arith.mulf %24, %23 : vector<8x128xf32>
    %cst_14 = arith.constant 0.707106769 : f32
    %26 = vector.broadcast %cst_14 : f32 to vector<8x128xf32>
    %27 = arith.mulf %23, %26 : vector<8x128xf32>
    %28 = math.erf %27 : vector<8x128xf32>
    %cst_15 = arith.constant 1.000000e+00 : f32
    %29 = vector.broadcast %cst_15 : f32 to vector<8x128xf32>
    %30 = arith.addf %29, %28 : vector<8x128xf32>
    %31 = arith.mulf %25, %30 : vector<8x128xf32>
    %c2 = arith.constant 2 : index
    %c0_16 = arith.constant 0 : index
    %c0_17 = arith.constant 0 : index
    %32 = vector.load %arg2[%c2, %c0_16, %c0_17] : memref<4x128x128xf32, #tpu.memory_space<vmem>>, vector<1x128x128xf32>
    %33 = vector.shape_cast %32 : vector<1x128x128xf32> to vector<128x128xf32>
    %cst_18 = arith.constant dense<0.000000e+00> : vector<8x128xf32>
    %34 = tpu.matmul %31, %33, %cst_18 {dimension_numbers = #tpu.dot_dimension_numbers<[1], [0], [0], [1], [0, 0, 1, 1], [], []>} : vector<8x128xf32>, vector<128x128xf32>, vector<8x128xf32> -> vector<8x128xf32>
    %35 = vector.extract_strided_slice %3 {offsets = [2, 0], sizes = [1, 128], strides = [1, 1]} : vector<4x128xf32> to vector<1x128xf32>
    %36 = vector.broadcast %35 : vector<1x128xf32> to vector<8x128xf32>
    %37 = arith.addf %34, %36 : vector<8x128xf32>
    %cst_19 = arith.constant 5.000000e-01 : f32
    %38 = vector.broadcast %cst_19 : f32 to vector<8x128xf32>
    %39 = arith.mulf %38, %37 : vector<8x128xf32>
    %cst_20 = arith.constant 0.707106769 : f32
    %40 = vector.broadcast %cst_20 : f32 to vector<8x128xf32>
    %41 = arith.mulf %37, %40 : vector<8x128xf32>
    %42 = math.erf %41 : vector<8x128xf32>
    %cst_21 = arith.constant 1.000000e+00 : f32
    %43 = vector.broadcast %cst_21 : f32 to vector<8x128xf32>
    %44 = arith.addf %43, %42 : vector<8x128xf32>
    %45 = arith.mulf %39, %44 : vector<8x128xf32>
    %c3 = arith.constant 3 : index
    %c0_22 = arith.constant 0 : index
    %c0_23 = arith.constant 0 : index
    %46 = vector.load %arg2[%c3, %c0_22, %c0_23] : memref<4x128x128xf32, #tpu.memory_space<vmem>>, vector<1x128x128xf32>
    %47 = vector.shape_cast %46 : vector<1x128x128xf32> to vector<128x128xf32>
    %cst_24 = arith.constant dense<0.000000e+00> : vector<8x128xf32>
    %48 = tpu.matmul %45, %47, %cst_24 {dimension_numbers = #tpu.dot_dimension_numbers<[1], [0], [0], [1], [0, 0, 1, 1], [], []>} : vector<8x128xf32>, vector<128x128xf32>, vector<8x128xf32> -> vector<8x128xf32>
    %49 = vector.extract_strided_slice %3 {offsets = [3, 0], sizes = [1, 128], strides = [1, 1]} : vector<4x128xf32> to vector<1x128xf32>
    %50 = vector.broadcast %49 : vector<1x128xf32> to vector<8x128xf32>
    %51 = arith.addf %48, %50 : vector<8x128xf32>
    %52 = vector.extract_strided_slice %51 {offsets = [0, 0], sizes = [8, 8], strides = [1, 1]} : vector<8x128xf32> to vector<8x8xf32>
    %c0_25 = arith.constant 0 : index
    %c0_26 = arith.constant 0 : index
    %53 = vector.load %arg4[%c0_25, %c0_26] : memref<8x8xf32, #tpu.memory_space<vmem>>, vector<8x8xf32>
    tpu.vector_store %arg4[%c0_25, %c0_26], %52 {strides = array<i32>} : memref<8x8xf32, #tpu.memory_space<vmem>>, vector<8x8xf32>,
    return
  }
  func.func @transform_0(%arg0: i32) -> (i32, i32) {
    %c0_i32 = arith.constant 0 : i32
    %c0_i32_0 = arith.constant 0 : i32
    return %arg0, %c0_i32 : i32, i32
  }
  func.func @transform_1(%arg0: i32) -> (i32, i32, i32) {
    %c0_i32 = arith.constant 0 : i32
    %c0_i32_0 = arith.constant 0 : i32
    %c0_i32_1 = arith.constant 0 : i32
    %c0_i32_2 = arith.constant 0 : i32
    return %c0_i32, %c0_i32_0, %c0_i32_1 : i32, i32, i32
  }
  func.func @transform_2(%arg0: i32) -> (i32, i32) {
    %c0_i32 = arith.constant 0 : i32
    %c0_i32_0 = arith.constant 0 : i32
    %c0_i32_1 = arith.constant 0 : i32
    return %c0_i32, %c0_i32_0 : i32, i32
  }
  func.func @transform_3(%arg0: i32) -> (i32, i32) {
    %c0_i32 = arith.constant 0 : i32
    %c0_i32_0 = arith.constant 0 : i32
    return %arg0, %c0_i32 : i32, i32
  }
}

</mosaic_0001>

<llo_original>
// kernel: propagator_concat_forward.1
$region0: #{propagator_concat_forward.1}
  #allocation0 [shape = 'u32[]', space=smem, size = 0x4, offset = 0x4, fixed_abs, tag = 'smem constant byte address 0x4 - core index']
  #allocation1 [shape = 'u32[144,128]{1,0:T(1,128)}', space=vmem, size = 0x12000, scoped, tag = 'internal scratch']
  %s0 = inlined_call_operand.vmem [shape: f32[8,10], index: 0, kind: input, shape index: {}]
  %s1 = inlined_call_operand.hbm [shape: f32[4,128,128], index: 1, kind: input, shape index: {}]
  %s2 = inlined_call_operand.vmem [shape: f32[4,128], index: 2, kind: input, shape index: {}]
  %s3 = inlined_call_operand.hbm [shape: f32[8,8], index: 3, kind: output, shape index: {}]
  %s4 = sld [smem:[#allocation0]]
  $region26: #{propagator_concat_forward.1} parent=0
    _
  %s6 = ssub.s32 1, %s4
  %s7 = scalar_select 0, %s6, %s4
  $region1: #{propagator_concat_forward.1} parent=0
    #allocation2 [shape = 'u8[262144]{0}', space=vmem, size = 0x40000, scoped, tag = 'input window, operand 1, single buffered']
    #allocation3 [shape = 's32[1]{0}', space=sflag, size = 0x4, scoped, tag = 'scoped memory for propagator_concat_forward.1']
    #allocation4 [shape = 's32[1]{0}', space=sflag, size = 0x4, scoped, tag = 'scoped memory for propagator_concat_forward.1']
    #allocation5 [shape = 'u8[4096]{0}', space=vmem, size = 0x1000, scoped, tag = 'output window, operand 0, single buffered']
    %8 = vsyncpa [#allocation3], 0
    %9 = vsyncpa [#allocation4], 0
    // Predicated region
    $region2: #{propagator_concat_forward.1} parent=1 // pred_check
      _
    $region3: #{propagator_concat_forward.1} parent=1 // pred_check_branch
      %11 = sbr.rel (0) target = $region5
    $region4: #{propagator_concat_forward.1} parent=1 // pred_region
      _
    $region5: #{propagator_concat_forward.1} parent=1 // pred_fallthru
      _
    // Predicated region
    $region6: #{propagator_concat_forward.1} parent=1 // pred_check
      _
    $region7: #{propagator_concat_forward.1} parent=1 // pred_check_branch
      %13 = sbr.rel (0) target = $region9
    $region8: #{propagator_concat_forward.1} parent=1 // pred_region
      %s15 = ssub.s32 8192, 8192
      %16 = vsyncadd [#allocation3], %s15
      %s17 = sshll.u32 [#allocation2], 4
      %s18 = int_to_ptr.vmem [resolvable:$true] %s17
      %23 = dma.hbm_to_vmem [thread:$0]  %s1, 8192, %s18, [#allocation3], 128, 128, 8
    $region9: #{propagator_concat_forward.1} parent=1 // pred_fallthru
      _
    // Predicated region
    $region10: #{propagator_concat_forward.1} parent=1 // pred_check
      _
    $region11: #{propagator_concat_forward.1} parent=1 // pred_check_branch
      %25 = sbr.rel (0) target = $region13
    $region12: #{propagator_concat_forward.1} parent=1 // pred_region
      _
    $region13: #{propagator_concat_forward.1} parent=1 // pred_fallthru
      _
    // Predicated region
    $region14: #{propagator_concat_forward.1} parent=1 // pred_check
      _
    $region15: #{propagator_concat_forward.1} parent=1 // pred_check_branch
      %27 = sbr.rel (0) target = $region17
    $region16: #{propagator_concat_forward.1} parent=1 // pred_region
      %28 = dma.done [#allocation3], 8192
    $region17: #{propagator_concat_forward.1} parent=1 // pred_fallthru
      _
    %v29 = vld [vmem:[%s0] sm:$0xff]
    %vm30 = vcmask 80896
    %v31 = vsel %vm30, %v29, 0.0
    %v32 = vld [vmem:[%s2] sm:$0xf]
    %v33 = vld [vmem:[#allocation2] sm:$0xff]
    %v34 = vld [vmem:[#allocation2 + $0x8] sm:$0xff]
    %v35 = vld [vmem:[#allocation2 + $0x10] sm:$0xff]
    %v36 = vld [vmem:[#allocation2 + $0x18] sm:$0xff]
    %v37 = vld [vmem:[#allocation2 + $0x20] sm:$0xff]
    %v38 = vld [vmem:[#allocation2 + $0x28] sm:$0xff]
    %v39 = vld [vmem:[#allocation2 + $0x30] sm:$0xff]
    %v40 = vld [vmem:[#allocation2 + $0x38] sm:$0xff]
    %v41 = vld [vmem:[#allocation2 + $0x40] sm:$0xff]
    %v42 = vld [vmem:[#allocation2 + $0x48] sm:$0xff]
    %v43 = vld [vmem:[#allocation2 + $0x50] sm:$0xff]
    %v44 = vld [vmem:[#allocation2 + $0x58] sm:$0xff]
    %v45 = vld [vmem:[#allocation2 + $0x60] sm:$0xff]
    %v46 = vld [vmem:[#allocation2 + $0x68] sm:$0xff]
    %v47 = vld [vmem:[#allocation2 + $0x70] sm:$0xff]
    %v48 = vld [vmem:[#allocation2 + $0x78] sm:$0xff]
    %v49 = vlaneseq
    %v50 = vshrl.u32 %v49, 7
    %v51 = vsub.s32 0, %v50
    %v52 = vrot.slane %v32, %v51
    %53 = vmatprep.subr.mxu0 0.0
    %54 = vmatpush1.msra.mxu0 %v33
    %55 = vmatprep.subr.mxu0 0.0
    %56 = vmatpush1.msra.mxu0 %v34
    %57 = vmatprep.subr.mxu0 0.0
    %58 = vmatpush1.msra.mxu0 %v35
    %59 = vmatprep.subr.mxu0 0.0
    %60 = vmatpush1.msra.mxu0 %v36
    %61 = vmatprep.subr.mxu0 0.0
    %62 = vmatpush1.msra.mxu0 %v37
    %63 = vmatprep.subr.mxu0 0.0
    %64 = vmatpush1.msra.mxu0 %v38
    %65 = vmatprep.subr.mxu0 0.0
    %66 = vmatpush1.msra.mxu0 %v39
    %67 = vmatprep.subr.mxu0 0.0
    %68 = vmatpush1.msra.mxu0 %v40
    %69 = vmatprep.subr.mxu0 0.0
    %70 = vmatpush1.msra.mxu0 %v41
    %71 = vmatprep.subr.mxu0 0.0
    %72 = vmatpush1.msra.mxu0 %v42
    %73 = vmatprep.subr.mxu0 0.0
    %74 = vmatpush1.msra.mxu0 %v43
    %75 = vmatprep.subr.mxu0 0.0
    %76 = vmatpush1.msra.mxu0 %v44
    %77 = vmatprep.subr.mxu0 0.0
    %78 = vmatpush1.msra.mxu0 %v45
    %79 = vmatprep.subr.mxu0 0.0
    %80 = vmatpush1.msra.mxu0 %v46
    %81 = vmatprep.subr.mxu0 0.0
    %82 = vmatpush1.msra.mxu0 %v47
    %83 = vmatprep.subr.mxu0 0.0
    %84 = vmatpush1.msra.mxu0 %v48
    %85 = vmatprep.subr.mxu0 0.0
    %86 = vmatpush1.msra.mxu0 0.0
    %87 = vmatprep.subr.mxu0 0.0
    %88 = vmatpush1.msra.mxu0 0.0
    %89 = vmatprep.subr.mxu0 0.0
    %90 = vmatpush1.msra.mxu0 0.0
    %91 = vmatprep.subr.mxu0 0.0
    %92 = vmatpush1.msra.mxu0 0.0
    %93 = vmatprep.subr.mxu0 0.0
    %94 = vmatpush1.msra.mxu0 0.0
    %95 = vmatprep.subr.mxu0 0.0
    %96 = vmatpush1.msra.mxu0 0.0
    %97 = vmatprep.subr.mxu0 0.0
    %98 = vmatpush1.msra.mxu0 0.0
    %99 = vmatprep.subr.mxu0 0.0
    %100 = vmatpush1.msra.mxu0 0.0
    %101 = vmatprep.subr.mxu0 0.0
    %102 = vmatpush1.msra.mxu0 0.0
    %103 = vmatprep.subr.mxu0 0.0
    %104 = vmatpush1.msra.mxu0 0.0
    %105 = vmatprep.subr.mxu0 0.0
    %106 = vmatpush1.msra.mxu0 0.0
    %107 = vmatprep.subr.mxu0 0.0
    %108 = vmatpush1.msra.mxu0 0.0
    %109 = vmatprep.subr.mxu0 0.0
    %110 = vmatpush1.msra.mxu0 0.0
    %111 = vmatprep.subr.mxu0 0.0
    %112 = vmatpush1.msra.mxu0 0.0
    %113 = vmatprep.subr.mxu0 0.0
    %114 = vmatpush1.msra.mxu0 0.0
    %115 = vmatprep.subr.mxu0 0.0
    %116 = vmatpush1.msra.mxu0 0.0
    %117 = vmatprep.mubr.f32.mxu0 0.0
    %118 = vmatmul.mubr.f32.gmra.mrb[0].mxu0 %v31
    %v119 = vpop.f32.mrb[0].mxu0
    %v120 = vadd.f32 %v52, %v119
    %v121 = vpop.f32.mrb[0].mxu0
    %122 = vdwg.mxu0
    %v123 = vmul.f32 %v120, 0.5
    %v124 = vmul.f32 %v120, 0.70710677
    %v125 = verf.f32.pop %v124
    %v126 = vadd.f32 %v125, 1.0
    %v127 = vmul.f32 %v123, %v126
    %s128 = scalar_lea.vmem [#allocation2], 128
    %v129 = vld [vmem:[%s128] sm:$0xff]
    %v130 = vld [vmem:[%s128 + $0x8] sm:$0xff]
    %v131 = vld [vmem:[%s128 + $0x10] sm:$0xff]
    %v132 = vld [vmem:[%s128 + $0x18] sm:$0xff]
    %v133 = vld [vmem:[%s128 + $0x20] sm:$0xff]
    %v134 = vld [vmem:[%s128 + $0x28] sm:$0xff]
    %v135 = vld [vmem:[%s128 + $0x30] sm:$0xff]
    %v136 = vld [vmem:[%s128 + $0x38] sm:$0xff]
    %v137 = vld [vmem:[%s128 + $0x40] sm:$0xff]
    %v138 = vld [vmem:[%s128 + $0x48] sm:$0xff]
    %v139 = vld [vmem:[%s128 + $0x50] sm:$0xff]
    %v140 = vld [vmem:[%s128 + $0x58] sm:$0xff]
    %v141 = vld [vmem:[%s128 + $0x60] sm:$0xff]
    %v142 = vld [vmem:[%s128 + $0x68] sm:$0xff]
    %v143 = vld [vmem:[%s128 + $0x70] sm:$0xff]
    %v144 = vld [vmem:[%s128 + $0x78] sm:$0xff]
    %v145 = vlaneseq
    %v146 = vshrl.u32 %v145, 7
    %v147 = vsub.s32 1, %v146
    %v148 = vrot.slane %v32, %v147
    %149 = vmatprep.subr.mxu0 0.0
    %150 = vmatpush1.msra.mxu0 %v129
    %151 = vmatprep.subr.mxu0 0.0
    %152 = vmatpush1.msra.mxu0 %v130
    %153 = vmatprep.subr.mxu0 0.0
    %154 = vmatpush1.msra.mxu0 %v131
    %155 = vmatprep.subr.mxu0 0.0
    %156 = vmatpush1.msra.mxu0 %v132
    %157 = vmatprep.subr.mxu0 0.0
    %158 = vmatpush1.msra.mxu0 %v133
    %159 = vmatprep.subr.mxu0 0.0
    %160 = vmatpush1.msra.mxu0 %v134
    %161 = vmatprep.subr.mxu0 0.0
    %162 = vmatpush1.msra.mxu0 %v135
    %163 = vmatprep.subr.mxu0 0.0
    %164 = vmatpush1.msra.mxu0 %v136
    %165 = vmatprep.subr.mxu0 0.0
    %166 = vmatpush1.msra.mxu0 %v137
    %167 = vmatprep.subr.mxu0 0.0
    %168 = vmatpush1.msra.mxu0 %v138
    %169 = vmatprep.subr.mxu0 0.0
    %170 = vmatpush1.msra.mxu0 %v139
    %171 = vmatprep.subr.mxu0 0.0
    %172 = vmatpush1.msra.mxu0 %v140
    %173 = vmatprep.subr.mxu0 0.0
    %174 = vmatpush1.msra.mxu0 %v141
    %175 = vmatprep.subr.mxu0 0.0
    %176 = vmatpush1.msra.mxu0 %v142
    %177 = vmatprep.subr.mxu0 0.0
    %178 = vmatpush1.msra.mxu0 %v143
    %179 = vmatprep.subr.mxu0 0.0
    %180 = vmatpush1.msra.mxu0 %v144
    %181 = vmatprep.subr.mxu0 0.0
    %182 = vmatpush1.msra.mxu0 0.0
    %183 = vmatprep.subr.mxu0 0.0
    %184 = vmatpush1.msra.mxu0 0.0
    %185 = vmatprep.subr.mxu0 0.0
    %186 = vmatpush1.msra.mxu0 0.0
    %187 = vmatprep.subr.mxu0 0.0
    %188 = vmatpush1.msra.mxu0 0.0
    %189 = vmatprep.subr.mxu0 0.0
    %190 = vmatpush1.msra.mxu0 0.0
    %191 = vmatprep.subr.mxu0 0.0
    %192 = vmatpush1.msra.mxu0 0.0
    %193 = vmatprep.subr.mxu0 0.0
    %194 = vmatpush1.msra.mxu0 0.0
    %195 = vmatprep.subr.mxu0 0.0
    %196 = vmatpush1.msra.mxu0 0.0
    %197 = vmatprep.subr.mxu0 0.0
    %198 = vmatpush1.msra.mxu0 0.0
    %199 = vmatprep.subr.mxu0 0.0
    %200 = vmatpush1.msra.mxu0 0.0
    %201 = vmatprep.subr.mxu0 0.0
    %202 = vmatpush1.msra.mxu0 0.0
    %203 = vmatprep.subr.mxu0 0.0
    %204 = vmatpush1.msra.mxu0 0.0
    %205 = vmatprep.subr.mxu0 0.0
    %206 = vmatpush1.msra.mxu0 0.0
    %207 = vmatprep.subr.mxu0 0.0
    %208 = vmatpush1.msra.mxu0 0.0
    %209 = vmatprep.subr.mxu0 0.0
    %210 = vmatpush1.msra.mxu0 0.0
    %211 = vmatprep.subr.mxu0 0.0
    %212 = vmatpush1.msra.mxu0 0.0
    %213 = vmatprep.mubr.f32.mxu0 0.0
    %214 = vmatmul.mubr.f32.gmra.mrb[0].mxu0 %v127
    %v215 = vpop.f32.mrb[0].mxu0
    %v216 = vadd.f32 %v148, %v215
    %v217 = vpop.f32.mrb[0].mxu0
    %218 = vdwg.mxu0
    %v219 = vmul.f32 %v216, 0.5
    %v220 = vmul.f32 %v216, 0.70710677
    %v221 = verf.f32.pop %v220
    %v222 = vadd.f32 %v221, 1.0
    %v223 = vmul.f32 %v219, %v222
    %s224 = scalar_lea.vmem [#allocation2], 256
    %v225 = vld [vmem:[%s224] sm:$0xff]
    %v226 = vld [vmem:[%s224 + $0x8] sm:$0xff]
    %v227 = vld [vmem:[%s224 + $0x10] sm:$0xff]
    %v228 = vld [vmem:[%s224 + $0x18] sm:$0xff]
    %v229 = vld [vmem:[%s224 + $0x20] sm:$0xff]
    %v230 = vld [vmem:[%s224 + $0x28] sm:$0xff]
    %v231 = vld [vmem:[%s224 + $0x30] sm:$0xff]
    %v232 = vld [vmem:[%s224 + $0x38] sm:$0xff]
    %v233 = vld [vmem:[%s224 + $0x40] sm:$0xff]
    %v234 = vld [vmem:[%s224 + $0x48] sm:$0xff]
    %v235 = vld [vmem:[%s224 + $0x50] sm:$0xff]
    %v236 = vld [vmem:[%s224 + $0x58] sm:$0xff]
    %v237 = vld [vmem:[%s224 + $0x60] sm:$0xff]
    %v238 = vld [vmem:[%s224 + $0x68] sm:$0xff]
    %v239 = vld [vmem:[%s224 + $0x70] sm:$0xff]
    %v240 = vld [vmem:[%s224 + $0x78] sm:$0xff]
    %v241 = vlaneseq
    %v242 = vshrl.u32 %v241, 7
    %v243 = vsub.s32 2, %v242
    %v244 = vrot.slane %v32, %v243
    %245 = vmatprep.subr.mxu0 0.0
    %246 = vmatpush1.msra.mxu0 %v225
    %247 = vmatprep.subr.mxu0 0.0
    %248 = vmatpush1.msra.mxu0 %v226
    %249 = vmatprep.subr.mxu0 0.0
    %250 = vmatpush1.msra.mxu0 %v227
    %251 = vmatprep.subr.mxu0 0.0
    %252 = vmatpush1.msra.mxu0 %v228
    %253 = vmatprep.subr.mxu0 0.0
    %254 = vmatpush1.msra.mxu0 %v229
    %255 = vmatprep.subr.mxu0 0.0
    %256 = vmatpush1.msra.mxu0 %v230
    %257 = vmatprep.subr.mxu0 0.0
    %258 = vmatpush1.msra.mxu0 %v231
    %259 = vmatprep.subr.mxu0 0.0
    %260 = vmatpush1.msra.mxu0 %v232
    %261 = vmatprep.subr.mxu0 0.0
    %262 = vmatpush1.msra.mxu0 %v233
    %263 = vmatprep.subr.mxu0 0.0
    %264 = vmatpush1.msra.mxu0 %v234
    %265 = vmatprep.subr.mxu0 0.0
    %266 = vmatpush1.msra.mxu0 %v235
    %267 = vmatprep.subr.mxu0 0.0
    %268 = vmatpush1.msra.mxu0 %v236
    %269 = vmatprep.subr.mxu0 0.0
    %270 = vmatpush1.msra.mxu0 %v237
    %271 = vmatprep.subr.mxu0 0.0
    %272 = vmatpush1.msra.mxu0 %v238
    %273 = vmatprep.subr.mxu0 0.0
    %274 = vmatpush1.msra.mxu0 %v239
    %275 = vmatprep.subr.mxu0 0.0
    %276 = vmatpush1.msra.mxu0 %v240
    %277 = vmatprep.subr.mxu0 0.0
    %278 = vmatpush1.msra.mxu0 0.0
    %279 = vmatprep.subr.mxu0 0.0
    %280 = vmatpush1.msra.mxu0 0.0
    %281 = vmatprep.subr.mxu0 0.0
    %282 = vmatpush1.msra.mxu0 0.0
    %283 = vmatprep.subr.mxu0 0.0
    %284 = vmatpush1.msra.mxu0 0.0
    %285 = vmatprep.subr.mxu0 0.0
    %286 = vmatpush1.msra.mxu0 0.0
    %287 = vmatprep.subr.mxu0 0.0
    %288 = vmatpush1.msra.mxu0 0.0
    %289 = vmatprep.subr.mxu0 0.0
    %290 = vmatpush1.msra.mxu0 0.0
    %291 = vmatprep.subr.mxu0 0.0
    %292 = vmatpush1.msra.mxu0 0.0
    %293 = vmatprep.subr.mxu0 0.0
    %294 = vmatpush1.msra.mxu0 0.0
    %295 = vmatprep.subr.mxu0 0.0
    %296 = vmatpush1.msra.mxu0 0.0
    %297 = vmatprep.subr.mxu0 0.0
    %298 = vmatpush1.msra.mxu0 0.0
    %299 = vmatprep.subr.mxu0 0.0
    %300 = vmatpush1.msra.mxu0 0.0
    %301 = vmatprep.subr.mxu0 0.0
    %302 = vmatpush1.msra.mxu0 0.0
    %303 = vmatprep.subr.mxu0 0.0
    %304 = vmatpush1.msra.mxu0 0.0
    %305 = vmatprep.subr.mxu0 0.0
    %306 = vmatpush1.msra.mxu0 0.0
    %307 = vmatprep.subr.mxu0 0.0
    %308 = vmatpush1.msra.mxu0 0.0
    %309 = vmatprep.mubr.f32.mxu0 0.0
    %310 = vmatmul.mubr.f32.gmra.mrb[0].mxu0 %v223
    %v311 = vpop.f32.mrb[0].mxu0
    %v312 = vadd.f32 %v244, %v311
    %v313 = vpop.f32.mrb[0].mxu0
    %314 = vdwg.mxu0
    %v315 = vmul.f32 %v312, 0.5
    %v316 = vmul.f32 %v312, 0.70710677
    %v317 = verf.f32.pop %v316
    %v318 = vadd.f32 %v317, 1.0
    %v319 = vmul.f32 %v315, %v318
    %s320 = scalar_lea.vmem [#allocation2], 384
    %v321 = vld [vmem:[%s320] sm:$0xff]
    %v322 = vld [vmem:[%s320 + $0x8] sm:$0xff]
    %v323 = vld [vmem:[%s320 + $0x10] sm:$0xff]
    %v324 = vld [vmem:[%s320 + $0x18] sm:$0xff]
    %v325 = vld [vmem:[%s320 + $0x20] sm:$0xff]
    %v326 = vld [vmem:[%s320 + $0x28] sm:$0xff]
    %v327 = vld [vmem:[%s320 + $0x30] sm:$0xff]
    %v328 = vld [vmem:[%s320 + $0x38] sm:$0xff]
    %v329 = vld [vmem:[%s320 + $0x40] sm:$0xff]
    %v330 = vld [vmem:[%s320 + $0x48] sm:$0xff]
    %v331 = vld [vmem:[%s320 + $0x50] sm:$0xff]
    %v332 = vld [vmem:[%s320 + $0x58] sm:$0xff]
    %v333 = vld [vmem:[%s320 + $0x60] sm:$0xff]
    %v334 = vld [vmem:[%s320 + $0x68] sm:$0xff]
    %v335 = vld [vmem:[%s320 + $0x70] sm:$0xff]
    %v336 = vld [vmem:[%s320 + $0x78] sm:$0xff]
    %v337 = vlaneseq
    %v338 = vshrl.u32 %v337, 7
    %v339 = vsub.s32 3, %v338
    %v340 = vrot.slane %v32, %v339
    %341 = vmatprep.subr.mxu0 0.0
    %342 = vmatpush1.msra.mxu0 %v321
    %343 = vmatprep.subr.mxu0 0.0
    %344 = vmatpush1.msra.mxu0 %v322
    %345 = vmatprep.subr.mxu0 0.0
    %346 = vmatpush1.msra.mxu0 %v323
    %347 = vmatprep.subr.mxu0 0.0
    %348 = vmatpush1.msra.mxu0 %v324
    %349 = vmatprep.subr.mxu0 0.0
    %350 = vmatpush1.msra.mxu0 %v325
    %351 = vmatprep.subr.mxu0 0.0
    %352 = vmatpush1.msra.mxu0 %v326
    %353 = vmatprep.subr.mxu0 0.0
    %354 = vmatpush1.msra.mxu0 %v327
    %355 = vmatprep.subr.mxu0 0.0
    %356 = vmatpush1.msra.mxu0 %v328
    %357 = vmatprep.subr.mxu0 0.0
    %358 = vmatpush1.msra.mxu0 %v329
    %359 = vmatprep.subr.mxu0 0.0
    %360 = vmatpush1.msra.mxu0 %v330
    %361 = vmatprep.subr.mxu0 0.0
    %362 = vmatpush1.msra.mxu0 %v331
    %363 = vmatprep.subr.mxu0 0.0
    %364 = vmatpush1.msra.mxu0 %v332
    %365 = vmatprep.subr.mxu0 0.0
    %366 = vmatpush1.msra.mxu0 %v333
    %367 = vmatprep.subr.mxu0 0.0
    %368 = vmatpush1.msra.mxu0 %v334
    %369 = vmatprep.subr.mxu0 0.0
    %370 = vmatpush1.msra.mxu0 %v335
    %371 = vmatprep.subr.mxu0 0.0
    %372 = vmatpush1.msra.mxu0 %v336
    %373 = vmatprep.subr.mxu0 0.0
    %374 = vmatpush1.msra.mxu0 0.0
    %375 = vmatprep.subr.mxu0 0.0
    %376 = vmatpush1.msra.mxu0 0.0
    %377 = vmatprep.subr.mxu0 0.0
    %378 = vmatpush1.msra.mxu0 0.0
    %379 = vmatprep.subr.mxu0 0.0
    %380 = vmatpush1.msra.mxu0 0.0
    %381 = vmatprep.subr.mxu0 0.0
    %382 = vmatpush1.msra.mxu0 0.0
    %383 = vmatprep.subr.mxu0 0.0
    %384 = vmatpush1.msra.mxu0 0.0
    %385 = vmatprep.subr.mxu0 0.0
    %386 = vmatpush1.msra.mxu0 0.0
    %387 = vmatprep.subr.mxu0 0.0
    %388 = vmatpush1.msra.mxu0 0.0
    %389 = vmatprep.subr.mxu0 0.0
    %390 = vmatpush1.msra.mxu0 0.0
    %391 = vmatprep.subr.mxu0 0.0
    %392 = vmatpush1.msra.mxu0 0.0
    %393 = vmatprep.subr.mxu0 0.0
    %394 = vmatpush1.msra.mxu0 0.0
    %395 = vmatprep.subr.mxu0 0.0
    %396 = vmatpush1.msra.mxu0 0.0
    %397 = vmatprep.subr.mxu0 0.0
    %398 = vmatpush1.msra.mxu0 0.0
    %399 = vmatprep.subr.mxu0 0.0
    %400 = vmatpush1.msra.mxu0 0.0
    %401 = vmatprep.subr.mxu0 0.0
    %402 = vmatpush1.msra.mxu0 0.0
    %403 = vmatprep.subr.mxu0 0.0
    %404 = vmatpush1.msra.mxu0 0.0
    %405 = vmatprep.mubr.f32.mxu0 0.0
    %406 = vmatmul.mubr.f32.gmra.mrb[0].mxu0 %v319
    %v407 = vpop.f32.mrb[0].mxu0
    %v408 = vadd.f32 %v340, %v407
    %v409 = vpop.f32.mrb[0].mxu0
    %410 = vdwg.mxu0
    %vm411 = vcmask 64512
    %412 = vst.msk [vmem:[#allocation5] sm:$0xff] %vm411, %v408
    // Predicated region
    $region18: #{propagator_concat_forward.1} parent=1 // pred_check
      _
    $region19: #{propagator_concat_forward.1} parent=1 // pred_check_branch
      %414 = sbr.rel (0) target = $region21
    $region20: #{propagator_concat_forward.1} parent=1 // pred_region
      %s416 = ssub.s32 128, 128
      %417 = vsyncadd [#allocation4], %s416
      %s419 = sshll.u32 [#allocation5], 4
      %s420 = int_to_ptr.vmem [resolvable:$true] %s419
      %422 = dma.vmem_to_hbm [thread:$0]  %s420, 128, %s3, [#allocation4]
    $region21: #{propagator_concat_forward.1} parent=1 // pred_fallthru
      _
    // Predicated region
    $region22: #{propagator_concat_forward.1} parent=1 // pred_check
      _
    $region23: #{propagator_concat_forward.1} parent=1 // pred_check_branch
      %424 = sbr.rel (0) target = $region25
    $region24: #{propagator_concat_forward.1} parent=1 // pred_region
      %425 = dma.done [#allocation4], 128
    $region25: #{propagator_concat_forward.1} parent=1 // pred_fallthru
      _
    %426 = vsyncpa [#allocation3], 1
    %427 = vsyncpa [#allocation4], 1

</llo_original>
